<compile_context>
chip_gen: v6e
topology: v6e:2x2x1
jax: 0.10.0
libtpu: 0.0.40
codegen_flags: <defaults>
</compile_context>

<pallas_src>
import functools

import jax
import jax.numpy as jnp
from jax.experimental import pallas as pl
from jax.experimental.pallas import tpu as pltpu


def _sepconv_fused_kernel(x_ref, w_ref, o_ref, *, K, dilation, Wp, Mp, B_blk):
    """Fused path (small Cin): one MXU matmul with combined dw*pw weights.

    x_ref : (B_blk, CP, Hp*Wp)   zero-padded image, flattened spatial (NCHW)
    w_ref : (Cout, K*K*CP)       combined weights (resident across grid steps)
    o_ref : (B_blk, Cout, OH*Wp) lane-dense output (wrap cols dropped later)
    """
    w = w_ref[...]
    for b in range(B_blk):                       # small, statically unrolled
        pad = x_ref[b]                           # (CP, Hp*Wp)
        # im2col via wrap-around slicing of the flat padded image: every tap
        # is one contiguous lane slice.  Columns ow in [OW, Wp) are wrap
        # garbage and are sliced away in the wrapper.
        parts = [pad[:, (kh * Wp + kw) * dilation:(kh * Wp + kw) * dilation + Mp]
                 for kh in range(K) for kw in range(K)]
        cols = jnp.concatenate(parts, axis=0)    # (K*K*CP, Mp)
        y = jnp.dot(w, cols, preferred_element_type=jnp.float32)
        o_ref[b, :, :Mp] = y.astype(o_ref.dtype)


def _sepconv_split_kernel(x_ref, dw_ref, pw_ref, o_ref, *, K, dilation, Wp, Mp,
                          B_blk):
    """Split path (large Cin): depthwise VPU accumulation + one pointwise matmul.

    x_ref  : (B_blk, CP, Hp*Wp)
    dw_ref : (CP, K*K)   f32 per-channel depthwise taps
    pw_ref : (Cout, CP)  pointwise weights
    o_ref  : (B_blk, Cout, OH*Wp)
    """
    pw = pw_ref[...]
    dw = dw_ref[...]
    for b in range(B_blk):
        pad = x_ref[b]                                        # (CP, Hp*Wp)
        acc = jnp.zeros((pad.shape[0], Mp), jnp.float32)
        for kh in range(K):
            for kw in range(K):
                t = kh * K + kw
                d = (kh * Wp + kw) * dilation
                acc = acc + pad[:, d:d + Mp].astype(jnp.float32) * dw[:, t:t + 1]
        y = jnp.dot(pw, acc.astype(pw.dtype), preferred_element_type=jnp.float32)
        o_ref[b, :, :Mp] = y.astype(o_ref.dtype)


def _mxu_contract_tile():
    """MXU contraction-tile size for the current backend (conservative)."""
    try:
        kind = jax.devices()[0].device_kind.lower()
    except Exception:
        kind = ""
    if any(t in kind for t in ("v2", "v3", "v4", "v5")):
        return 128
    return 256                                   # v6e / v7x


def separable_conv2d(x_nchw, w_dw, w_pw, *, stride=1, padding=0, dilation=1):
    """x_nchw: (N, Cin, H, W); w_dw: (Cin, 1, K, K); w_pw: (Cout, Cin, 1, 1)."""
    N, Cin, H, W = x_nchw.shape
    K = w_dw.shape[-1]
    Cout = w_pw.shape[0]
    dtype = x_nchw.dtype
    isz = jnp.dtype(dtype).itemsize

    Hp, Wp = H + 2 * padding, W + 2 * padding
    OH = Hp - dilation * (K - 1)                 # stride-1 output extent
    OW = Wp - dilation * (K - 1)
    assert OH >= 1 and OW >= 1, "kernel/dilation larger than padded input"

    # Dtype-aware channel pad (sublane pack: 8 f32 / 16 bf16 / 32 int8).
    sub = 8 * max(1, 4 // isz)
    CP = -(-Cin // sub) * sub

    # Wrap-around im2col invariant: largest tap slice must stay in-bounds
    # (VMEM refs have no runtime bounds check).
    Mp = (OH - 1) * Wp + OW
    d_max = (K - 1) * dilation * (Wp + 1)
    assert d_max + Mp <= Hp * Wp, "im2col wrap-around slice would be OOB"

    fused = K * K * CP <= _mxu_contract_tile()

    # ---- weights (host-side, one-time) --------------------------------------
    wd = w_dw[:, 0, :, :].astype(jnp.float32)                 # (Cin, K, K)
    wp = w_pw[:, :, 0, 0].astype(jnp.float32)                 # (Cout, Cin)
    if fused:
        # comb[o, kh, kw, c] = pw[o, c] * dw[c, kh, kw]  -> (Cout, K*K*CP)
        comb = wp[:, None, None, :] * jnp.transpose(wd, (1, 2, 0))[None]
        comb = jnp.pad(comb, ((0, 0), (0, 0), (0, 0), (0, CP - Cin)))
        w_args = (comb.reshape(Cout, K * K * CP).astype(dtype),)
        w_specs = [pl.BlockSpec((Cout, K * K * CP), lambda n: (0, 0))]
        w_bytes = Cout * K * K * CP * isz
    else:
        dw_mat = jnp.pad(wd.reshape(Cin, K * K), ((0, CP - Cin), (0, 0)))
        pw_mat = jnp.pad(wp, ((0, 0), (0, CP - Cin))).astype(dtype)
        w_args = (dw_mat, pw_mat)
        w_specs = [pl.BlockSpec((CP, K * K), lambda n: (0, 0)),
                   pl.BlockSpec((Cout, CP), lambda n: (0, 0))]
        w_bytes = CP * K * K * 4 + Cout * CP * isz

    # ---- input: channel pad + spatial border pad in ONE fused XLA op --------
    xp = jnp.pad(x_nchw, ((0, 0), (0, CP - Cin),
                          (padding, padding), (padding, padding)))
    xp = xp.reshape(N, CP, Hp * Wp)              # free reshape, no transpose

    # ---- batch blocking: amortize per-grid-step overhead at small sizes -----
    per_batch = CP * Hp * Wp * isz + Cout * OH * Wp * isz + Cout * Mp * 4
    per_batch += (K * K * CP * Mp * isz) if fused else (CP * Mp * 4)
    B_blk = 1
    for b in range(1, min(N, 8) + 1):
        if N % b == 0 and 2 * b * per_batch <= 8 * 2 ** 20:
            B_blk = b

    vmem_limit = int(min(64 * 2 ** 20,
                         max(32 * 2 ** 20, 4 * B_blk * per_batch + 2 * w_bytes)))

    # TODO(synk): for large images add a spatial grid axis (output-row tiles
    # with a (K-1)*dilation input halo) so block + im2col fit v7x's 64 MiB VMEM.
    if fused:
        kernel = functools.partial(_sepconv_fused_kernel, K=K, dilation=dilation,
                                   Wp=Wp, Mp=Mp, B_blk=B_blk)
    else:
        kernel = functools.partial(_sepconv_split_kernel, K=K, dilation=dilation,
                                   Wp=Wp, Mp=Mp, B_blk=B_blk)

    out = pl.pallas_call(
        kernel,
        out_shape=jax.ShapeDtypeStruct((N, Cout, OH * Wp), dtype),
        grid_spec=pltpu.PrefetchScalarGridSpec(
            num_scalar_prefetch=0,
            grid=(N // B_blk,),
            in_specs=[pl.BlockSpec((B_blk, CP, Hp * Wp), lambda n: (n, 0, 0))]
                     + w_specs,
            out_specs=pl.BlockSpec((B_blk, Cout, OH * Wp), lambda n: (n, 0, 0)),
        ),
        compiler_params=pltpu.CompilerParams(
            dimension_semantics=("parallel",),
            vmem_limit_bytes=vmem_limit),
    )(xp, *w_args)

    # Drop the (Wp - OW) wrap columns of each output row: cheap contiguous slice.
    out = out.reshape(N, Cout, OH, Wp)[:, :, :, :OW]
    if stride != 1:
        # TODO(synk): subsample output rows inside the kernel (strided im2col)
        # instead of computing the dense stride-1 output and slicing here.
        out = out[:, :, ::stride, ::stride]
    return out


def _reference(x_nchw, w_dw, w_pw, *, stride, padding, dilation):
    """Pure-JAX reference (lax conv), for correctness check only."""
    Cin = x_nchw.shape[1]
    dn = jax.lax.conv_dimension_numbers(x_nchw.shape, w_dw.shape,
                                        ("NCHW", "OIHW", "NCHW"))
    y = jax.lax.conv_general_dilated(
        x_nchw, w_dw, window_strides=(stride, stride),
        padding=[(padding, padding), (padding, padding)],
        rhs_dilation=(dilation, dilation), dimension_numbers=dn,
        feature_group_count=Cin)
    y = jax.lax.conv_general_dilated(
        y, w_pw, window_strides=(1, 1), padding="VALID",
        dimension_numbers=dn)
    return y


if __name__ == "__main__":
    key = jax.random.PRNGKey(0)

    def run_case(N, Cin, Cout, H, W, K, stride, padding, dilation, subkey, tag):
        kx, kd, kp = jax.random.split(subkey, 3)
        x = jax.random.normal(kx, (N, Cin, H, W), dtype=jnp.float32)
        # PyTorch weight shapes: conv1 (Cin,1,K,K); pointwise (Cout,Cin,1,1).
        w_dw = jax.random.normal(kd, (Cin, 1, K, K), dtype=jnp.float32) * 0.1
        w_pw = jax.random.normal(kp, (Cout, Cin, 1, 1), dtype=jnp.float32) * 0.1
        out = separable_conv2d(x, w_dw, w_pw, stride=stride, padding=padding,
                               dilation=dilation)
        out = jax.block_until_ready(out)
        ref = _reference(x, w_dw, w_pw, stride=stride, padding=padding,
                         dilation=dilation)
        assert out.shape == ref.shape, (tag, out.shape, ref.shape)
        err = float(jnp.max(jnp.abs(out - ref)))
        assert jnp.allclose(out, ref, atol=2e-3, rtol=2e-3), (tag, err)

    k1, k2 = jax.random.split(key)
    # Primary config (SeparableConv2d(4, 8, 3, stride=1, padding=1)): fused path.
    run_case(2, 4, 8, 16, 16, 3, 1, 1, 1, k1, "fused")
    # Larger-channel config: exercises the split depthwise+pointwise path
    # (K*K*CP > MXU contraction tile) and the stride>1 handling.
    run_case(2, 32, 16, 12, 12, 3, 2, 1, 1, k2, "split")
    print("KERNEL_OK")
</pallas_src>

<mosaic_0001>
module attributes {stable_mosaic.version = 11 : i64} {
  func.func @_sepconv_fused_kernel(%arg0: i32, %arg1: memref<2x8x324xf32, #tpu.memory_space<vmem>>, %arg2: memref<8x72xf32, #tpu.memory_space<vmem>>, %arg3: memref<2x8x288xf32, #tpu.memory_space<vmem>>) attributes {dimension_semantics = [#tpu.dimension_semantics<parallel>], iteration_bounds = array<i64: 1>, scalar_prefetch = 0 : i64, scratch_operands = 0 : i64, tpu.core_type = #tpu.core_type<tc>, window_params = [{transform_indices = @transform_0, window_bounds = array<i64: 2, 8, 324>}, {pipeline_mode = #tpu.pipeline_mode<synchronous>, transform_indices = @transform_1, window_bounds = array<i64: 8, 72>}, {transform_indices = @transform_2, window_bounds = array<i64: 2, 8, 288>}]} {
    %c0 = arith.constant 0 : index
    %c0_0 = arith.constant 0 : index
    %0 = vector.load %arg2[%c0, %c0_0] : memref<8x72xf32, #tpu.memory_space<vmem>>, vector<8x72xf32>
    %c0_1 = arith.constant 0 : index
    %c0_2 = arith.constant 0 : index
    %c0_3 = arith.constant 0 : index
    %1 = vector.load %arg1[%c0_1, %c0_2, %c0_3] : memref<2x8x324xf32, #tpu.memory_space<vmem>>, vector<1x8x324xf32>
    %2 = vector.shape_cast %1 : vector<1x8x324xf32> to vector<8x324xf32>
    %3 = vector.extract_strided_slice %2 {offsets = [0, 0], sizes = [8, 286], strides = [1, 1]} : vector<8x324xf32> to vector<8x286xf32>
    %4 = vector.extract_strided_slice %2 {offsets = [0, 1], sizes = [8, 286], strides = [1, 1]} : vector<8x324xf32> to vector<8x286xf32>
    %5 = vector.extract_strided_slice %2 {offsets = [0, 2], sizes = [8, 286], strides = [1, 1]} : vector<8x324xf32> to vector<8x286xf32>
    %6 = vector.extract_strided_slice %2 {offsets = [0, 18], sizes = [8, 286], strides = [1, 1]} : vector<8x324xf32> to vector<8x286xf32>
    %7 = vector.extract_strided_slice %2 {offsets = [0, 19], sizes = [8, 286], strides = [1, 1]} : vector<8x324xf32> to vector<8x286xf32>
    %8 = vector.extract_strided_slice %2 {offsets = [0, 20], sizes = [8, 286], strides = [1, 1]} : vector<8x324xf32> to vector<8x286xf32>
    %9 = vector.extract_strided_slice %2 {offsets = [0, 36], sizes = [8, 286], strides = [1, 1]} : vector<8x324xf32> to vector<8x286xf32>
    %10 = vector.extract_strided_slice %2 {offsets = [0, 37], sizes = [8, 286], strides = [1, 1]} : vector<8x324xf32> to vector<8x286xf32>
    %11 = vector.extract_strided_slice %2 {offsets = [0, 38], sizes = [8, 286], strides = [1, 1]} : vector<8x324xf32> to vector<8x286xf32>
    %12 = tpu.concatenate %3, %4, %5, %6, %7, %8, %9, %10, %11 in 0 : vector<8x286xf32>, vector<8x286xf32>, vector<8x286xf32>, vector<8x286xf32>, vector<8x286xf32>, vector<8x286xf32>, vector<8x286xf32>, vector<8x286xf32>, vector<8x286xf32> -> vector<72x286xf32>
    %cst = arith.constant dense<0.000000e+00> : vector<8x286xf32>
    %13 = tpu.matmul %0, %12, %cst {dimension_numbers = #tpu.dot_dimension_numbers<[1], [0], [0], [1], [0, 0, 1, 1], [], []>} : vector<8x72xf32>, vector<72x286xf32>, vector<8x286xf32> -> vector<8x286xf32>
    %c0_4 = arith.constant 0 : index
    %c0_5 = arith.constant 0 : index
    %c0_6 = arith.constant 0 : index
    %14 = vector.load %arg3[%c0_4, %c0_5, %c0_6] : memref<2x8x288xf32, #tpu.memory_space<vmem>>, vector<1x8x286xf32>
    %15 = vector.shape_cast %14 : vector<1x8x286xf32> to vector<8x286xf32>
    %16 = vector.shape_cast %13 : vector<8x286xf32> to vector<1x8x286xf32>
    tpu.vector_store %arg3[%c0_4, %c0_5, %c0_6], %16 {strides = array<i32>} : memref<2x8x288xf32, #tpu.memory_space<vmem>>, vector<1x8x286xf32>,
    %c1 = arith.constant 1 : index
    %c0_7 = arith.constant 0 : index
    %c0_8 = arith.constant 0 : index
    %17 = vector.load %arg1[%c1, %c0_7, %c0_8] : memref<2x8x324xf32, #tpu.memory_space<vmem>>, vector<1x8x324xf32>
    %18 = vector.shape_cast %17 : vector<1x8x324xf32> to vector<8x324xf32>
    %19 = vector.extract_strided_slice %18 {offsets = [0, 0], sizes = [8, 286], strides = [1, 1]} : vector<8x324xf32> to vector<8x286xf32>
    %20 = vector.extract_strided_slice %18 {offsets = [0, 1], sizes = [8, 286], strides = [1, 1]} : vector<8x324xf32> to vector<8x286xf32>
    %21 = vector.extract_strided_slice %18 {offsets = [0, 2], sizes = [8, 286], strides = [1, 1]} : vector<8x324xf32> to vector<8x286xf32>
    %22 = vector.extract_strided_slice %18 {offsets = [0, 18], sizes = [8, 286], strides = [1, 1]} : vector<8x324xf32> to vector<8x286xf32>
    %23 = vector.extract_strided_slice %18 {offsets = [0, 19], sizes = [8, 286], strides = [1, 1]} : vector<8x324xf32> to vector<8x286xf32>
    %24 = vector.extract_strided_slice %18 {offsets = [0, 20], sizes = [8, 286], strides = [1, 1]} : vector<8x324xf32> to vector<8x286xf32>
    %25 = vector.extract_strided_slice %18 {offsets = [0, 36], sizes = [8, 286], strides = [1, 1]} : vector<8x324xf32> to vector<8x286xf32>
    %26 = vector.extract_strided_slice %18 {offsets = [0, 37], sizes = [8, 286], strides = [1, 1]} : vector<8x324xf32> to vector<8x286xf32>
    %27 = vector.extract_strided_slice %18 {offsets = [0, 38], sizes = [8, 286], strides = [1, 1]} : vector<8x324xf32> to vector<8x286xf32>
    %28 = tpu.concatenate %19, %20, %21, %22, %23, %24, %25, %26, %27 in 0 : vector<8x286xf32>, vector<8x286xf32>, vector<8x286xf32>, vector<8x286xf32>, vector<8x286xf32>, vector<8x286xf32>, vector<8x286xf32>, vector<8x286xf32>, vector<8x286xf32> -> vector<72x286xf32>
    %cst_9 = arith.constant dense<0.000000e+00> : vector<8x286xf32>
    %29 = tpu.matmul %0, %28, %cst_9 {dimension_numbers = #tpu.dot_dimension_numbers<[1], [0], [0], [1], [0, 0, 1, 1], [], []>} : vector<8x72xf32>, vector<72x286xf32>, vector<8x286xf32> -> vector<8x286xf32>
    %c1_10 = arith.constant 1 : index
    %c0_11 = arith.constant 0 : index
    %c0_12 = arith.constant 0 : index
    %30 = vector.load %arg3[%c1_10, %c0_11, %c0_12] : memref<2x8x288xf32, #tpu.memory_space<vmem>>, vector<1x8x286xf32>
    %31 = vector.shape_cast %30 : vector<1x8x286xf32> to vector<8x286xf32>
    %32 = vector.shape_cast %29 : vector<8x286xf32> to vector<1x8x286xf32>
    tpu.vector_store %arg3[%c1_10, %c0_11, %c0_12], %32 {strides = array<i32>} : memref<2x8x288xf32, #tpu.memory_space<vmem>>, vector<1x8x286xf32>,
    return
  }
  func.func @transform_0(%arg0: i32) -> (i32, i32, i32) {
    %c0_i32 = arith.constant 0 : i32
    %c0_i32_0 = arith.constant 0 : i32
    %c0_i32_1 = arith.constant 0 : i32
    return %arg0, %c0_i32, %c0_i32_0 : i32, i32, i32
  }
  func.func @transform_1(%arg0: i32) -> (i32, i32) {
    %c0_i32 = arith.constant 0 : i32
    %c0_i32_0 = arith.constant 0 : i32
    %c0_i32_1 = arith.constant 0 : i32
    return %c0_i32, %c0_i32_0 : i32, i32
  }
  func.func @transform_2(%arg0: i32) -> (i32, i32, i32) {
    %c0_i32 = arith.constant 0 : i32
    %c0_i32_0 = arith.constant 0 : i32
    %c0_i32_1 = arith.constant 0 : i32
    return %arg0, %c0_i32, %c0_i32_0 : i32, i32, i32
  }
}

</mosaic_0001>

<llo_original>
// kernel: tpu_custom_call.1
$region0: #{tpu_custom_call.1}
  #allocation0 [shape = 'u32[]', space=smem, size = 0x4, offset = 0x4, fixed_abs, tag = 'smem constant byte address 0x4 - core index']
  #allocation1 [shape = 'u32[144,128]{1,0:T(1,128)}', space=vmem, size = 0x12000, scoped, tag = 'internal scratch']
  %s0 = inlined_call_operand.hbm [shape: f32[2,8,324], index: 0, kind: input, shape index: {}]
  %s1 = inlined_call_operand.hbm [shape: f32[8,72], index: 1, kind: input, shape index: {}]
  %s2 = inlined_call_operand.hbm [shape: f32[2,8,288], index: 2, kind: output, shape index: {}]
  %s3 = sld [smem:[#allocation0]]
  $region26: #{tpu_custom_call.1} parent=0
    _
  %s5 = ssub.s32 1, %s3
  %s6 = scalar_select 0, %s5, %s3
  $region1: #{tpu_custom_call.1} parent=0
    #allocation2 [shape = 'u8[24576]{0}', space=vmem, size = 0x6000, scoped, tag = 'input window, operand 0, single buffered']
    #allocation3 [shape = 's32[1]{0}', space=sflag, size = 0x4, scoped, tag = 'scoped memory for tpu_custom_call.1']
    #allocation4 [shape = 's32[1]{0}', space=sflag, size = 0x4, scoped, tag = 'scoped memory for tpu_custom_call.1']
    #allocation5 [shape = 'u8[4096]{0}', space=vmem, size = 0x1000, scoped, tag = 'input window, operand 1, single buffered']
    #allocation6 [shape = 's32[1]{0}', space=sflag, size = 0x4, scoped, tag = 'scoped memory for tpu_custom_call.1']
    #allocation7 [shape = 'u8[24576]{0}', space=vmem, size = 0x6000, scoped, tag = 'output window, operand 0, single buffered']
    %7 = vsyncpa [#allocation3], 0
    %8 = vsyncpa [#allocation6], 0
    %9 = vsyncpa [#allocation4], 0
    // Predicated region
    $region2: #{tpu_custom_call.1} parent=1 // pred_check
      _
    $region3: #{tpu_custom_call.1} parent=1 // pred_check_branch
      %11 = sbr.rel (0) target = $region5
    $region4: #{tpu_custom_call.1} parent=1 // pred_region
      %s13 = ssub.s32 768, 768
      %14 = vsyncadd [#allocation3], %s13
      %s15 = sshll.u32 [#allocation2], 4
      %s16 = int_to_ptr.vmem [resolvable:$true] %s15
      %21 = dma.hbm_to_vmem [thread:$0]  %s0, 768, %s16, [#allocation3], 384, 384, 24
    $region5: #{tpu_custom_call.1} parent=1 // pred_fallthru
      _
    // Predicated region
    $region6: #{tpu_custom_call.1} parent=1 // pred_check
      _
    $region7: #{tpu_custom_call.1} parent=1 // pred_check_branch
      %23 = sbr.rel (0) target = $region9
    $region8: #{tpu_custom_call.1} parent=1 // pred_region
      %s25 = ssub.s32 128, 128
      %26 = vsyncadd [#allocation6], %s25
      %s28 = sshll.u32 [#allocation5], 4
      %s29 = int_to_ptr.vmem [resolvable:$true] %s28
      %31 = dma.hbm_to_vmem [thread:$0]  %s1, 128, %s29, [#allocation6]
    $region9: #{tpu_custom_call.1} parent=1 // pred_fallthru
      _
    // Predicated region
    $region10: #{tpu_custom_call.1} parent=1 // pred_check
      _
    $region11: #{tpu_custom_call.1} parent=1 // pred_check_branch
      %33 = sbr.rel (0) target = $region13
    $region12: #{tpu_custom_call.1} parent=1 // pred_region
      %34 = dma.done [#allocation3], 768
    $region13: #{tpu_custom_call.1} parent=1 // pred_fallthru
      _
    // Predicated region
    $region14: #{tpu_custom_call.1} parent=1 // pred_check
      _
    $region15: #{tpu_custom_call.1} parent=1 // pred_check_branch
      %36 = sbr.rel (0) target = $region17
    $region16: #{tpu_custom_call.1} parent=1 // pred_region
      %37 = dma.done [#allocation6], 128
    $region17: #{tpu_custom_call.1} parent=1 // pred_fallthru
      _
    %v38 = vld [vmem:[#allocation5] sm:$0xff]
    %v39 = vld [vmem:[#allocation2] sm:$0xff]
    %v40 = vld [vmem:[#allocation2 + $0x8] sm:$0xff]
    %v41 = vld [vmem:[#allocation2 + $0x10] sm:$0xff]
    %45 = vrot.lane.b32.xlu0 %v39, 127
    %v46 = vpop.permute.xlu0 %45
    %47 = vrot.lane.b32.xlu0 %v40, 127
    %v48 = vpop.permute.xlu0 %47
    %49 = vrot.lane.b32.xlu0 %v41, 127
    %v50 = vpop.permute.xlu0 %49
    %vm51 = vcmask 1039360
    %v52 = vsel %vm51, %v46, %v48
    %v53 = vsel %vm51, %v48, %v50
    %57 = vrot.lane.b32.xlu0 %v39, 126
    %v58 = vpop.permute.xlu0 %57
    %59 = vrot.lane.b32.xlu0 %v40, 126
    %v60 = vpop.permute.xlu0 %59
    %61 = vrot.lane.b32.xlu0 %v41, 126
    %v62 = vpop.permute.xlu0 %61
    %vm63 = vcmask 1031168
    %v64 = vsel %vm63, %v58, %v60
    %v65 = vsel %vm63, %v60, %v62
    %69 = vrot.lane.b32.xlu0 %v39, 110
    %v70 = vpop.permute.xlu0 %69
    %71 = vrot.lane.b32.xlu0 %v40, 110
    %v72 = vpop.permute.xlu0 %71
    %73 = vrot.lane.b32.xlu0 %v41, 110
    %v74 = vpop.permute.xlu0 %73
    %vm75 = vcmask 900096
    %v76 = vsel %vm75, %v70, %v72
    %v77 = vsel %vm75, %v72, %v74
    %81 = vrot.lane.b32.xlu0 %v39, 109
    %v82 = vpop.permute.xlu0 %81
    %83 = vrot.lane.b32.xlu0 %v40, 109
    %v84 = vpop.permute.xlu0 %83
    %85 = vrot.lane.b32.xlu0 %v41, 109
    %v86 = vpop.permute.xlu0 %85
    %vm87 = vcmask 891904
    %v88 = vsel %vm87, %v82, %v84
    %v89 = vsel %vm87, %v84, %v86
    %93 = vrot.lane.b32.xlu0 %v39, 108
    %v94 = vpop.permute.xlu0 %93
    %95 = vrot.lane.b32.xlu0 %v40, 108
    %v96 = vpop.permute.xlu0 %95
    %97 = vrot.lane.b32.xlu0 %v41, 108
    %v98 = vpop.permute.xlu0 %97
    %vm99 = vcmask 883712
    %v100 = vsel %vm99, %v94, %v96
    %v101 = vsel %vm99, %v96, %v98
    %105 = vrot.lane.b32.xlu0 %v39, 92
    %v106 = vpop.permute.xlu0 %105
    %107 = vrot.lane.b32.xlu0 %v40, 92
    %v108 = vpop.permute.xlu0 %107
    %109 = vrot.lane.b32.xlu0 %v41, 92
    %v110 = vpop.permute.xlu0 %109
    %vm111 = vcmask 752640
    %v112 = vsel %vm111, %v106, %v108
    %v113 = vsel %vm111, %v108, %v110
    %117 = vrot.lane.b32.xlu0 %v39, 91
    %v118 = vpop.permute.xlu0 %117
    %119 = vrot.lane.b32.xlu0 %v40, 91
    %v120 = vpop.permute.xlu0 %119
    %121 = vrot.lane.b32.xlu0 %v41, 91
    %v122 = vpop.permute.xlu0 %121
    %vm123 = vcmask 744448
    %v124 = vsel %vm123, %v118, %v120
    %v125 = vsel %vm123, %v120, %v122
    %129 = vrot.lane.b32.xlu0 %v39, 90
    %v130 = vpop.permute.xlu0 %129
    %131 = vrot.lane.b32.xlu0 %v40, 90
    %v132 = vpop.permute.xlu0 %131
    %133 = vrot.lane.b32.xlu0 %v41, 90
    %v134 = vpop.permute.xlu0 %133
    %vm135 = vcmask 736256
    %v136 = vsel %vm135, %v130, %v132
    %v137 = vsel %vm135, %v132, %v134
    %vm141 = vcmask 588800
    %v143 = vsel %vm141, %v38, 0
    %145 = vmatprep.subr.mxu0 0.0
    %146 = vmatpush1.msra.mxu0 0.0
    %147 = vmatprep.subr.mxu0 0.0
    %148 = vmatpush1.msra.mxu0 0.0
    %149 = vmatprep.subr.mxu0 0.0
    %150 = vmatpush1.msra.mxu0 0.0
    %151 = vmatprep.subr.mxu0 0.0
    %152 = vmatpush1.msra.mxu0 0.0
    %153 = vmatprep.subr.mxu0 0.0
    %154 = vmatpush1.msra.mxu0 0.0
    %155 = vmatprep.subr.mxu0 0.0
    %156 = vmatpush1.msra.mxu0 0.0
    %157 = vmatprep.subr.mxu0 0.0
    %158 = vmatpush1.msra.mxu0 0.0
    %159 = vmatprep.subr.mxu0 %v137
    %160 = vmatpush1.msra.mxu0 %v136
    %161 = vmatprep.subr.mxu0 %v125
    %162 = vmatpush1.msra.mxu0 %v124
    %163 = vmatprep.subr.mxu0 %v113
    %164 = vmatpush1.msra.mxu0 %v112
    %165 = vmatprep.subr.mxu0 %v101
    %166 = vmatpush1.msra.mxu0 %v100
    %167 = vmatprep.subr.mxu0 %v89
    %168 = vmatpush1.msra.mxu0 %v88
    %169 = vmatprep.subr.mxu0 %v77
    %170 = vmatpush1.msra.mxu0 %v76
    %171 = vmatprep.subr.mxu0 %v65
    %172 = vmatpush1.msra.mxu0 %v64
    %173 = vmatprep.subr.mxu0 %v53
    %174 = vmatpush1.msra.mxu0 %v52
    %175 = vmatprep.subr.mxu0 %v40
    %176 = vmatpush1.msra.mxu0 %v39
    %177 = vmatprep.subr.mxu0 0.0
    %178 = vmatpush2.msra.mxu0 0.0
    %179 = vmatprep.subr.mxu0 0.0
    %180 = vmatpush2.msra.mxu0 0.0
    %181 = vmatprep.subr.mxu0 0.0
    %182 = vmatpush2.msra.mxu0 0.0
    %183 = vmatprep.subr.mxu0 0.0
    %184 = vmatpush2.msra.mxu0 0.0
    %185 = vmatprep.subr.mxu0 0.0
    %186 = vmatpush2.msra.mxu0 0.0
    %187 = vmatprep.subr.mxu0 0.0
    %188 = vmatpush2.msra.mxu0 0.0
    %189 = vmatprep.subr.mxu0 0.0
    %190 = vmatpush2.msra.mxu0 0.0
    %191 = vmatprep.subr.mxu0 0.0
    %192 = vmatpush2.msra.mxu0 0.0
    %193 = vmatprep.subr.mxu0 0.0
    %194 = vmatpush2.msra.mxu0 0.0
    %195 = vmatprep.subr.mxu0 0.0
    %196 = vmatpush2.msra.mxu0 0.0
    %197 = vmatprep.subr.mxu0 0.0
    %198 = vmatpush2.msra.mxu0 0.0
    %199 = vmatprep.subr.mxu0 0.0
    %200 = vmatpush2.msra.mxu0 0.0
    %201 = vmatprep.subr.mxu0 0.0
    %202 = vmatpush2.msra.mxu0 0.0
    %203 = vmatprep.subr.mxu0 0.0
    %204 = vmatpush2.msra.mxu0 0.0
    %205 = vmatprep.subr.mxu0 0.0
    %206 = vmatpush2.msra.mxu0 0.0
    %207 = vmatprep.subr.mxu0 0.0
    %208 = vmatpush2.msra.mxu0 0.0
    %209 = vmatprep.mubr.f32.mxu0 0.0
    %210 = vmatmul.mubr.f32.gmra.mxu0 %v143
    %v211 = vpop.f32.mrf.mxu0
    %v212 = vadd.f32 0.0, %v211
    %v213 = vpop.f32.mrf.mxu0
    %v214 = vadd.f32 0.0, %v213
    %215 = vdwg.mxu0
    %216 = vmatprep.subr.mxu0 0.0
    %217 = vmatpush1.msra.mxu0 0.0
    %218 = vmatprep.subr.mxu0 0.0
    %219 = vmatpush1.msra.mxu0 0.0
    %220 = vmatprep.subr.mxu0 0.0
    %221 = vmatpush1.msra.mxu0 0.0
    %222 = vmatprep.subr.mxu0 0.0
    %223 = vmatpush1.msra.mxu0 0.0
    %224 = vmatprep.subr.mxu0 0.0
    %225 = vmatpush1.msra.mxu0 0.0
    %226 = vmatprep.subr.mxu0 0.0
    %227 = vmatpush1.msra.mxu0 0.0
    %228 = vmatprep.subr.mxu0 0.0
    %229 = vmatpush1.msra.mxu0 0.0
    %230 = vmatprep.subr.mxu0 0.0
    %231 = vmatpush1.msra.mxu0 %v134
    %232 = vmatprep.subr.mxu0 0.0
    %233 = vmatpush1.msra.mxu0 %v122
    %234 = vmatprep.subr.mxu0 0.0
    %235 = vmatpush1.msra.mxu0 %v110
    %236 = vmatprep.subr.mxu0 0.0
    %237 = vmatpush1.msra.mxu0 %v98
    %238 = vmatprep.subr.mxu0 0.0
    %239 = vmatpush1.msra.mxu0 %v86
    %240 = vmatprep.subr.mxu0 0.0
    %241 = vmatpush1.msra.mxu0 %v74
    %242 = vmatprep.subr.mxu0 0.0
    %243 = vmatpush1.msra.mxu0 %v62
    %244 = vmatprep.subr.mxu0 0.0
    %245 = vmatpush1.msra.mxu0 %v50
    %246 = vmatprep.subr.mxu0 0.0
    %247 = vmatpush1.msra.mxu0 %v41
    %248 = vmatprep.subr.mxu0 0.0
    %249 = vmatpush2.msra.mxu0 0.0
    %250 = vmatprep.subr.mxu0 0.0
    %251 = vmatpush2.msra.mxu0 0.0
    %252 = vmatprep.subr.mxu0 0.0
    %253 = vmatpush2.msra.mxu0 0.0
    %254 = vmatprep.subr.mxu0 0.0
    %255 = vmatpush2.msra.mxu0 0.0
    %256 = vmatprep.subr.mxu0 0.0
    %257 = vmatpush2.msra.mxu0 0.0
    %258 = vmatprep.subr.mxu0 0.0
    %259 = vmatpush2.msra.mxu0 0.0
    %260 = vmatprep.subr.mxu0 0.0
    %261 = vmatpush2.msra.mxu0 0.0
    %262 = vmatprep.subr.mxu0 0.0
    %263 = vmatpush2.msra.mxu0 0.0
    %264 = vmatprep.subr.mxu0 0.0
    %265 = vmatpush2.msra.mxu0 0.0
    %266 = vmatprep.subr.mxu0 0.0
    %267 = vmatpush2.msra.mxu0 0.0
    %268 = vmatprep.subr.mxu0 0.0
    %269 = vmatpush2.msra.mxu0 0.0
    %270 = vmatprep.subr.mxu0 0.0
    %271 = vmatpush2.msra.mxu0 0.0
    %272 = vmatprep.subr.mxu0 0.0
    %273 = vmatpush2.msra.mxu0 0.0
    %274 = vmatprep.subr.mxu0 0.0
    %275 = vmatpush2.msra.mxu0 0.0
    %276 = vmatprep.subr.mxu0 0.0
    %277 = vmatpush2.msra.mxu0 0.0
    %278 = vmatprep.subr.mxu0 0.0
    %279 = vmatpush2.msra.mxu0 0.0
    %280 = vmatprep.mubr.f32.mxu0 0.0
    %281 = vmatmul.mubr.f32.gmra.mxu0 %v143
    %v282 = vpop.f32.mrf.mxu0
    %v283 = vadd.f32 0.0, %v282
    %v284 = vpop.f32.mrf.mxu0
    %285 = vdwg.mxu0
    %286 = vst [vmem:[#allocation7] sm:$0xff] %v212
    %287 = vst [vmem:[#allocation7 + $0x8] sm:$0xff] %v214
    %vm288 = vcmask 244736
    %289 = vst.msk [vmem:[#allocation7 + $0x10] sm:$0xff] %vm288, %v283
    %s290 = scalar_lea.vmem [#allocation2], 24
    %v291 = vld [vmem:[%s290] sm:$0xff]
    %v292 = vld [vmem:[%s290 + $0x8] sm:$0xff]
    %v293 = vld [vmem:[%s290 + $0x10] sm:$0xff]
    %297 = vrot.lane.b32.xlu0 %v291, 127
    %v298 = vpop.permute.xlu0 %297
    %299 = vrot.lane.b32.xlu0 %v292, 127
    %v300 = vpop.permute.xlu0 %299
    %301 = vrot.lane.b32.xlu0 %v293, 127
    %v302 = vpop.permute.xlu0 %301
    %v303 = vsel %vm51, %v298, %v300
    %v304 = vsel %vm51, %v300, %v302
    %308 = vrot.lane.b32.xlu0 %v291, 126
    %v309 = vpop.permute.xlu0 %308
    %310 = vrot.lane.b32.xlu0 %v292, 126
    %v311 = vpop.permute.xlu0 %310
    %312 = vrot.lane.b32.xlu0 %v293, 126
    %v313 = vpop.permute.xlu0 %312
    %v314 = vsel %vm63, %v309, %v311
    %v315 = vsel %vm63, %v311, %v313
    %319 = vrot.lane.b32.xlu0 %v291, 110
    %v320 = vpop.permute.xlu0 %319
    %321 = vrot.lane.b32.xlu0 %v292, 110
    %v322 = vpop.permute.xlu0 %321
    %323 = vrot.lane.b32.xlu0 %v293, 110
    %v324 = vpop.permute.xlu0 %323
    %v325 = vsel %vm75, %v320, %v322
    %v326 = vsel %vm75, %v322, %v324
    %330 = vrot.lane.b32.xlu0 %v291, 109
    %v331 = vpop.permute.xlu0 %330
    %332 = vrot.lane.b32.xlu0 %v292, 109
    %v333 = vpop.permute.xlu0 %332
    %334 = vrot.lane.b32.xlu0 %v293, 109
    %v335 = vpop.permute.xlu0 %334
    %v336 = vsel %vm87, %v331, %v333
    %v337 = vsel %vm87, %v333, %v335
    %341 = vrot.lane.b32.xlu0 %v291, 108
    %v342 = vpop.permute.xlu0 %341
    %343 = vrot.lane.b32.xlu0 %v292, 108
    %v344 = vpop.permute.xlu0 %343
    %345 = vrot.lane.b32.xlu0 %v293, 108
    %v346 = vpop.permute.xlu0 %345
    %v347 = vsel %vm99, %v342, %v344
    %v348 = vsel %vm99, %v344, %v346
    %352 = vrot.lane.b32.xlu0 %v291, 92
    %v353 = vpop.permute.xlu0 %352
    %354 = vrot.lane.b32.xlu0 %v292, 92
    %v355 = vpop.permute.xlu0 %354
    %356 = vrot.lane.b32.xlu0 %v293, 92
    %v357 = vpop.permute.xlu0 %356
    %v358 = vsel %vm111, %v353, %v355
    %v359 = vsel %vm111, %v355, %v357
    %363 = vrot.lane.b32.xlu0 %v291, 91
    %v364 = vpop.permute.xlu0 %363
    %365 = vrot.lane.b32.xlu0 %v292, 91
    %v366 = vpop.permute.xlu0 %365
    %367 = vrot.lane.b32.xlu0 %v293, 91
    %v368 = vpop.permute.xlu0 %367
    %v369 = vsel %vm123, %v364, %v366
    %v370 = vsel %vm123, %v366, %v368
    %374 = vrot.lane.b32.xlu0 %v291, 90
    %v375 = vpop.permute.xlu0 %374
    %376 = vrot.lane.b32.xlu0 %v292, 90
    %v377 = vpop.permute.xlu0 %376
    %378 = vrot.lane.b32.xlu0 %v293, 90
    %v379 = vpop.permute.xlu0 %378
    %v380 = vsel %vm135, %v375, %v377
    %v381 = vsel %vm135, %v377, %v379
    %385 = vmatprep.subr.mxu0 0.0
    %386 = vmatpush1.msra.mxu0 0.0
    %387 = vmatprep.subr.mxu0 0.0
    %388 = vmatpush1.msra.mxu0 0.0
    %389 = vmatprep.subr.mxu0 0.0
    %390 = vmatpush1.msra.mxu0 0.0
    %391 = vmatprep.subr.mxu0 0.0
    %392 = vmatpush1.msra.mxu0 0.0
    %393 = vmatprep.subr.mxu0 0.0
    %394 = vmatpush1.msra.mxu0 0.0
    %395 = vmatprep.subr.mxu0 0.0
    %396 = vmatpush1.msra.mxu0 0.0
    %397 = vmatprep.subr.mxu0 0.0
    %398 = vmatpush1.msra.mxu0 0.0
    %399 = vmatprep.subr.mxu0 %v381
    %400 = vmatpush1.msra.mxu0 %v380
    %401 = vmatprep.subr.mxu0 %v370
    %402 = vmatpush1.msra.mxu0 %v369
    %403 = vmatprep.subr.mxu0 %v359
    %404 = vmatpush1.msra.mxu0 %v358
    %405 = vmatprep.subr.mxu0 %v348
    %406 = vmatpush1.msra.mxu0 %v347
    %407 = vmatprep.subr.mxu0 %v337
    %408 = vmatpush1.msra.mxu0 %v336
    %409 = vmatprep.subr.mxu0 %v326
    %410 = vmatpush1.msra.mxu0 %v325
    %411 = vmatprep.subr.mxu0 %v315
    %412 = vmatpush1.msra.mxu0 %v314
    %413 = vmatprep.subr.mxu0 %v304
    %414 = vmatpush1.msra.mxu0 %v303
    %415 = vmatprep.subr.mxu0 %v292
    %416 = vmatpush1.msra.mxu0 %v291
    %417 = vmatprep.subr.mxu0 0.0
    %418 = vmatpush2.msra.mxu0 0.0
    %419 = vmatprep.subr.mxu0 0.0
    %420 = vmatpush2.msra.mxu0 0.0
    %421 = vmatprep.subr.mxu0 0.0
    %422 = vmatpush2.msra.mxu0 0.0
    %423 = vmatprep.subr.mxu0 0.0
    %424 = vmatpush2.msra.mxu0 0.0
    %425 = vmatprep.subr.mxu0 0.0
    %426 = vmatpush2.msra.mxu0 0.0
    %427 = vmatprep.subr.mxu0 0.0
    %428 = vmatpush2.msra.mxu0 0.0
    %429 = vmatprep.subr.mxu0 0.0
    %430 = vmatpush2.msra.mxu0 0.0
    %431 = vmatprep.subr.mxu0 0.0
    %432 = vmatpush2.msra.mxu0 0.0
    %433 = vmatprep.subr.mxu0 0.0
    %434 = vmatpush2.msra.mxu0 0.0
    %435 = vmatprep.subr.mxu0 0.0
    %436 = vmatpush2.msra.mxu0 0.0
    %437 = vmatprep.subr.mxu0 0.0
    %438 = vmatpush2.msra.mxu0 0.0
    %439 = vmatprep.subr.mxu0 0.0
    %440 = vmatpush2.msra.mxu0 0.0
    %441 = vmatprep.subr.mxu0 0.0
    %442 = vmatpush2.msra.mxu0 0.0
    %443 = vmatprep.subr.mxu0 0.0
    %444 = vmatpush2.msra.mxu0 0.0
    %445 = vmatprep.subr.mxu0 0.0
    %446 = vmatpush2.msra.mxu0 0.0
    %447 = vmatprep.subr.mxu0 0.0
    %448 = vmatpush2.msra.mxu0 0.0
    %449 = vmatprep.mubr.f32.mxu0 0.0
    %450 = vmatmul.mubr.f32.gmra.mxu0 %v143
    %v451 = vpop.f32.mrf.mxu0
    %v452 = vadd.f32 0.0, %v451
    %v453 = vpop.f32.mrf.mxu0
    %v454 = vadd.f32 0.0, %v453
    %455 = vdwg.mxu0
    %456 = vmatprep.subr.mxu0 0.0
    %457 = vmatpush1.msra.mxu0 0.0
    %458 = vmatprep.subr.mxu0 0.0
    %459 = vmatpush1.msra.mxu0 0.0
    %460 = vmatprep.subr.mxu0 0.0
    %461 = vmatpush1.msra.mxu0 0.0
    %462 = vmatprep.subr.mxu0 0.0
    %463 = vmatpush1.msra.mxu0 0.0
    %464 = vmatprep.subr.mxu0 0.0
    %465 = vmatpush1.msra.mxu0 0.0
    %466 = vmatprep.subr.mxu0 0.0
    %467 = vmatpush1.msra.mxu0 0.0
    %468 = vmatprep.subr.mxu0 0.0
    %469 = vmatpush1.msra.mxu0 0.0
    %470 = vmatprep.subr.mxu0 0.0
    %471 = vmatpush1.msra.mxu0 %v379
    %472 = vmatprep.subr.mxu0 0.0
    %473 = vmatpush1.msra.mxu0 %v368
    %474 = vmatprep.subr.mxu0 0.0
    %475 = vmatpush1.msra.mxu0 %v357
    %476 = vmatprep.subr.mxu0 0.0
    %477 = vmatpush1.msra.mxu0 %v346
    %478 = vmatprep.subr.mxu0 0.0
    %479 = vmatpush1.msra.mxu0 %v335
    %480 = vmatprep.subr.mxu0 0.0
    %481 = vmatpush1.msra.mxu0 %v324
    %482 = vmatprep.subr.mxu0 0.0
    %483 = vmatpush1.msra.mxu0 %v313
    %484 = vmatprep.subr.mxu0 0.0
    %485 = vmatpush1.msra.mxu0 %v302
    %486 = vmatprep.subr.mxu0 0.0
    %487 = vmatpush1.msra.mxu0 %v293
    %488 = vmatprep.subr.mxu0 0.0
    %489 = vmatpush2.msra.mxu0 0.0
    %490 = vmatprep.subr.mxu0 0.0
    %491 = vmatpush2.msra.mxu0 0.0
    %492 = vmatprep.subr.mxu0 0.0
    %493 = vmatpush2.msra.mxu0 0.0
    %494 = vmatprep.subr.mxu0 0.0
    %495 = vmatpush2.msra.mxu0 0.0
    %496 = vmatprep.subr.mxu0 0.0
    %497 = vmatpush2.msra.mxu0 0.0
    %498 = vmatprep.subr.mxu0 0.0
    %499 = vmatpush2.msra.mxu0 0.0
    %500 = vmatprep.subr.mxu0 0.0
    %501 = vmatpush2.msra.mxu0 0.0
    %502 = vmatprep.subr.mxu0 0.0
    %503 = vmatpush2.msra.mxu0 0.0
    %504 = vmatprep.subr.mxu0 0.0
    %505 = vmatpush2.msra.mxu0 0.0
    %506 = vmatprep.subr.mxu0 0.0
    %507 = vmatpush2.msra.mxu0 0.0
    %508 = vmatprep.subr.mxu0 0.0
    %509 = vmatpush2.msra.mxu0 0.0
    %510 = vmatprep.subr.mxu0 0.0
    %511 = vmatpush2.msra.mxu0 0.0
    %512 = vmatprep.subr.mxu0 0.0
    %513 = vmatpush2.msra.mxu0 0.0
    %514 = vmatprep.subr.mxu0 0.0
    %515 = vmatpush2.msra.mxu0 0.0
    %516 = vmatprep.subr.mxu0 0.0
    %517 = vmatpush2.msra.mxu0 0.0
    %518 = vmatprep.subr.mxu0 0.0
    %519 = vmatpush2.msra.mxu0 0.0
    %520 = vmatprep.mubr.f32.mxu0 0.0
    %521 = vmatmul.mubr.f32.gmra.mxu0 %v143
    %v522 = vpop.f32.mrf.mxu0
    %v523 = vadd.f32 0.0, %v522
    %v524 = vpop.f32.mrf.mxu0
    %525 = vdwg.mxu0
    %s526 = scalar_lea.vmem [#allocation7], 24
    %527 = vst [vmem:[%s526] sm:$0xff] %v452
    %528 = vst [vmem:[%s526 + $0x8] sm:$0xff] %v454
    %529 = vst.msk [vmem:[%s526 + $0x10] sm:$0xff] %vm288, %v523
    // Predicated region
    $region18: #{tpu_custom_call.1} parent=1 // pred_check
      _
    $region19: #{tpu_custom_call.1} parent=1 // pred_check_branch
      %531 = sbr.rel (0) target = $region21
    $region20: #{tpu_custom_call.1} parent=1 // pred_region
      %s533 = ssub.s32 768, 768
      %534 = vsyncadd [#allocation4], %s533
      %s535 = sshll.u32 [#allocation7], 4
      %s536 = int_to_ptr.vmem [resolvable:$true] %s535
      %541 = dma.vmem_to_hbm [thread:$0]  %s536, 768, %s2, [#allocation4], 384, 384, 24
    $region21: #{tpu_custom_call.1} parent=1 // pred_fallthru
      _
    // Predicated region
    $region22: #{tpu_custom_call.1} parent=1 // pred_check
      _
    $region23: #{tpu_custom_call.1} parent=1 // pred_check_branch
      %543 = sbr.rel (0) target = $region25
    $region24: #{tpu_custom_call.1} parent=1 // pred_region
      %544 = dma.done [#allocation4], 768
    $region25: #{tpu_custom_call.1} parent=1 // pred_fallthru
      _
    %545 = vsyncpa [#allocation3], 1
    %546 = vsyncpa [#allocation6], 1
    %547 = vsyncpa [#allocation4], 1

</llo_original>
